<compile_context>
chip_gen: v7x
topology: tpu7x:2x2x1
jax: 0.10.0
libtpu: 0.0.40
codegen_flags: <defaults>
</compile_context>

<pallas_src>
import functools
import math

import jax
import jax.numpy as jnp
from jax.experimental import pallas as pl
from jax.experimental.pallas import tpu as pltpu


# ---------------------------------------------------------------------------
# Kernel body
# ---------------------------------------------------------------------------
def _token_dropout_kernel(u_ref, x_ref, o_ref, *, p: float):
    # One keep/drop decision per token (row), broadcast across the hidden (lane) dim.
    keep = u_ref[...] > p                                   # (tile_t, 1) bool
    o_ref[...] = jnp.where(keep, x_ref[...], 0).astype(o_ref.dtype)


# ---------------------------------------------------------------------------
# Tile sizing (byte-budget driven, dtype-aware, v7x-safe)
# ---------------------------------------------------------------------------
_VMEM_PIPELINE_BUDGET = 20 << 20   # total double-buffered working set target (bytes)
_MAX_X_BLOCK_BYTES = 4 << 20       # per-block x tile cap (v7x-safe)
_U_PAD_BYTES_PER_ROW = 128 * 4     # (tile_t, 1) f32 block lane-pads to 128 lanes in VMEM


def _sublane_multiple(itemsize: int) -> int:
    # vreg sublane packing: 8 rows for 4-byte, 16 for 2-byte, 32 for 1-byte dtypes.
    return max(8, 32 // max(itemsize, 1))


def _choose_tile_t(t: int, h: int, itemsize: int) -> int:
    sub = _sublane_multiple(itemsize)
    if t <= sub:
        return t

    row_x = h * itemsize
    # Double-buffered per-row VMEM footprint:
    #   x-in (2 buffers) + out (2 buffers) + lane-padded u (2 buffers).
    per_row = 4 * row_x + 2 * _U_PAD_BYTES_PER_ROW
    tile = _VMEM_PIPELINE_BUDGET // per_row
    tile = min(tile, _MAX_X_BLOCK_BYTES // max(row_x, 1), t)
    tile = max(tile - tile % sub, sub)

    # Prefer >= 2 blocks and an even grid so v7x's two TensorCores split evenly.
    grid = pl.cdiv(t, tile)
    if grid % 2 == 1:
        target_grid = grid + 1 if grid > 1 else 2
        new_tile = -(-t // target_grid)            # ceil division
        new_tile = -(-new_tile // sub) * sub       # round UP to sublane multiple
        if 0 < new_tile <= tile:
            tile = new_tile
    return tile


# ---------------------------------------------------------------------------
# Wrapper
# ---------------------------------------------------------------------------
def token_dropout(x, *, p: float = 0.1, seed: int = 0, training: bool = True):
    """Pallas implementation of Token_Dropout.forward."""
    if not training:
        return x

    orig_shape = x.shape
    h = orig_shape[-1]
    t = int(math.prod(orig_shape[:-1]))
    xf = x.reshape(t, h)
    itemsize = jnp.dtype(x.dtype).itemsize

    # Per-token uniforms in [0, 1), matching torch.rand(x.shape[:-1]) distributionally.
    # NOTE: callers must thread a distinct seed per layer/step or masks repeat.
    u = jax.random.uniform(jax.random.PRNGKey(seed), (t, 1), dtype=jnp.float32)

    tile_t = _choose_tile_t(t, h, itemsize)
    grid = (pl.cdiv(t, tile_t),)

    kernel = functools.partial(_token_dropout_kernel, p=p)

    out = pl.pallas_call(
        kernel,
        out_shape=jax.ShapeDtypeStruct((t, h), x.dtype),
        grid=grid,
        in_specs=[
            pl.BlockSpec((tile_t, 1), lambda i: (i, 0)),   # per-token uniforms
            pl.BlockSpec((tile_t, h), lambda i: (i, 0)),   # activations (lane-dense)
        ],
        out_specs=pl.BlockSpec((tile_t, h), lambda i: (i, 0)),
        compiler_params=pltpu.CompilerParams(
            dimension_semantics=("parallel",),   # megacore sharding on v7x
            vmem_limit_bytes=32 << 20,           # explicit scoped-VMEM budget (v5e/v7x safe)
        ),
        cost_estimate=pl.CostEstimate(
            flops=t * h,
            transcendentals=0,
            bytes_accessed=2 * t * h * itemsize + t * 4,
        ),
    )(u, xf)

    return out.reshape(orig_shape)


# ---------------------------------------------------------------------------
# Self-test
# ---------------------------------------------------------------------------
if __name__ == "__main__":
    # Small shapes consistent with the module's usage: (batch, seq, hidden).
    B, S, H = 2, 8, 32
    key = jax.random.PRNGKey(0)
    x = jax.random.normal(key, (B, S, H), dtype=jnp.float32)

    p = 0.1
    seed = 1234
    y_train = token_dropout(x, p=p, seed=seed, training=True)
    y_eval = token_dropout(x, p=p, seed=seed, training=False)
    jax.block_until_ready(y_train)
    jax.block_until_ready(y_eval)

    # Eval mode is identity.
    assert jnp.array_equal(y_eval, x)

    # Training mode: each token row is either exactly x or exactly 0 (no rescale).
    yr = y_train.reshape(-1, H)
    xr = x.reshape(-1, H)
    kept = jnp.all(yr == xr, axis=-1)
    dropped = jnp.all(yr == 0.0, axis=-1)
    assert bool(jnp.all(kept | dropped))

    # The kept pattern must match the deterministic per-token uniforms.
    u_chk = jax.random.uniform(jax.random.PRNGKey(seed), (B * S, 1), dtype=jnp.float32)
    assert bool(jnp.all(kept == (u_chk[:, 0] > p)))

    # Sanity-check the tile chooser on a few realistic shapes (pure Python, no TPU work).
    for tt, hh, isz in [(2 * 512, 768, 4), (8 * 4096, 128, 2), (4 * 1024, 1024, 4), (16, 32, 4)]:
        tile = _choose_tile_t(tt, hh, isz)
        assert tile >= 1 and tile <= tt
        assert tile % _sublane_multiple(isz) == 0 or tile == tt

    print("KERNEL_OK")
</pallas_src>

<mosaic_0001>
module attributes {stable_mosaic.version = 11 : i64} {
  func.func @_token_dropout_kernel(%arg0: i32, %arg1: memref<8x1xf32, #tpu.memory_space<vmem>>, %arg2: memref<8x32xf32, #tpu.memory_space<vmem>>, %arg3: memref<8x32xf32, #tpu.memory_space<vmem>>) attributes {dimension_semantics = [#tpu.dimension_semantics<parallel>], iteration_bounds = array<i64: 2>, scalar_prefetch = 0 : i64, scratch_operands = 0 : i64, tpu.core_type = #tpu.core_type<tc>, window_params = [{transform_indices = @transform_0, window_bounds = array<i64: 8, 1>}, {transform_indices = @transform_1, window_bounds = array<i64: 8, 32>}, {transform_indices = @transform_2, window_bounds = array<i64: 8, 32>}]} {
    %c0 = arith.constant 0 : index
    %c0_0 = arith.constant 0 : index
    %0 = vector.load %arg1[%c0, %c0_0] : memref<8x1xf32, #tpu.memory_space<vmem>>, vector<8x1xf32>
    %cst = arith.constant 1.000000e-01 : f32
    %1 = vector.broadcast %cst : f32 to vector<8x1xf32>
    %2 = arith.cmpf ogt, %0, %1 : vector<8x1xf32>
    %c0_1 = arith.constant 0 : index
    %c0_2 = arith.constant 0 : index
    %3 = vector.load %arg2[%c0_1, %c0_2] : memref<8x32xf32, #tpu.memory_space<vmem>>, vector<8x32xf32>
    %c0_i32 = arith.constant 0 : i32
    %4 = arith.sitofp %c0_i32 : i32 to f32
    %5 = vector.shape_cast %2 : vector<8x1xi1> to vector<8x1xi1>
    %6 = vector.broadcast %5 : vector<8x1xi1> to vector<8x32xi1>
    %7 = vector.broadcast %4 : f32 to vector<8x32xf32>
    %8 = arith.select %6, %3, %7 : vector<8x32xi1>, vector<8x32xf32>
    %c0_3 = arith.constant 0 : index
    %c0_4 = arith.constant 0 : index
    %9 = vector.load %arg3[%c0_3, %c0_4] : memref<8x32xf32, #tpu.memory_space<vmem>>, vector<8x32xf32>
    tpu.vector_store %arg3[%c0_3, %c0_4], %8 {strides = array<i32>} : memref<8x32xf32, #tpu.memory_space<vmem>>, vector<8x32xf32>,
    return
  }
  func.func @transform_0(%arg0: i32) -> (i32, i32) {
    %c0_i32 = arith.constant 0 : i32
    %c0_i32_0 = arith.constant 0 : i32
    return %arg0, %c0_i32 : i32, i32
  }
  func.func @transform_1(%arg0: i32) -> (i32, i32) {
    %c0_i32 = arith.constant 0 : i32
    %c0_i32_0 = arith.constant 0 : i32
    return %arg0, %c0_i32 : i32, i32
  }
  func.func @transform_2(%arg0: i32) -> (i32, i32) {
    %c0_i32 = arith.constant 0 : i32
    %c0_i32_0 = arith.constant 0 : i32
    return %arg0, %c0_i32 : i32, i32
  }
}

</mosaic_0001>

<llo_original>
// kernel: tpu_custom_call.1
$region0: #{tpu_custom_call.1}
  #allocation0 [shape = 'u32[]', space=smem, size = 0x4, offset = 0x4, fixed_abs, tag = 'smem constant byte address 0x4 - core index']
  #allocation1 [shape = 'u32[144,128]{1,0:T(1,128)}', space=vmem, size = 0x12000, scoped, tag = 'internal scratch']
  %s0 = inlined_call_operand.vmem [shape: f32[16,1], index: 0, kind: input, shape index: {}]
  %s1 = inlined_call_operand.vmem [shape: f32[16,32], index: 1, kind: input, shape index: {}]
  %s2 = inlined_call_operand.hbm [shape: f32[16,32], index: 2, kind: output, shape index: {}]
  %s3 = sld [smem:[#allocation0]]
  $region41: #{tpu_custom_call.1} parent=0
    _
  %s5 = ssub.s32 1, %s3
  %s6 = scalar_select 0, %s5, %s3
  $region1: #{tpu_custom_call.1} parent=0
    #allocation2 [shape = 'u8[8192]{0}', space=vmem, size = 0x2000, scoped, tag = 'output window, operand 0']
    #allocation3 [shape = 's32[2]{0}', space=sflag, size = 0x8, scoped, tag = 'scoped memory for tpu_custom_call.1']
    %7 = vsyncpa [#allocation3], 0
    %s8 = scalar_lea.sflag [#allocation3], 1
    %9 = vsyncpa %s8, 0
    loop: start=0, step=1, limit=4
    $region2: #{tpu_custom_call.1} parent=1 // loop_pre_header
      _
    $region3: #{tpu_custom_call.1} parent=1 // loop_header
      %s11 = sphi 0, %s15
      %p12 = scmp.ge.s32.totalorder %s11, 4
      %s21 = sphi 0, %s23
      %s24 = sphi 0, %s21
      %s25 = sphi 0, %s24
      %s41 = sphi 0, %s25
      %s47 = sphi 0, %s49
      %s50 = sphi 0, %s47
      %s51 = sphi 0, %s50
      %s67 = sphi 0, %s51
      %s73 = sphi 0, %s75
      %s76 = sphi 0, %s73
      %s77 = sphi 0, %s76
      %s93 = sphi 0, %s77
    $region4: #{tpu_custom_call.1} parent=1 // loop_header_branch
      %14 = sbr.rel (%p12) target = $region8
    $region5: #{tpu_custom_call.1} parent=1 // loop_body
      %s16 = ssub.s32 %s11, 1
      %s17 = ssub.s32 %s11, 2
      %s18 = sadd.s32 %s11, 1
      %s19 = ssub.s32 %s11, %s18
      %p20 = scmp.eq.s32.totalorder %s19, 0
      %s22 = sadd.s32 %s21, 1
      %s23 = scalar_select %p20, %s21, %s22
      %p26 = pneg %p20
      %p27 = scmp.eq.s32.totalorder %s11, 1
      %p28 = por %p26, %p27
      %p29 = scmp.ne.s32.totalorder %s21, %s24
      %p30 = scmp.eq.s32.totalorder %s11, 0
      %p31 = por %p29, %p30
      %p32 = scmp.ne.s32.totalorder %s21, %s24
      %p33 = scmp.eq.s32.totalorder %s16, 1
      %p34 = por %p32, %p33
      %p35 = scmp.ne.s32.totalorder %s24, %s25
      %p36 = scmp.eq.s32.totalorder %s16, 0
      %p37 = por %p35, %p36
      %p38 = scmp.ne.s32.totalorder %s24, %s25
      %p39 = scmp.eq.s32.totalorder %s17, 1
      %p40 = por %p38, %p39
      %p42 = scmp.ne.s32.totalorder %s25, %s41
      %p43 = scmp.eq.s32.totalorder %s17, 0
      %p44 = por %p42, %p43
      %s45 = ssub.s32 %s11, %s18
      %p46 = scmp.eq.s32.totalorder %s45, 0
      %s48 = sadd.s32 %s47, 1
      %s49 = scalar_select %p46, %s47, %s48
      %p52 = pneg %p46
      %p53 = scmp.eq.s32.totalorder %s11, 1
      %p54 = por %p52, %p53
      %p55 = scmp.ne.s32.totalorder %s47, %s50
      %p56 = scmp.eq.s32.totalorder %s11, 0
      %p57 = por %p55, %p56
      %p58 = scmp.ne.s32.totalorder %s47, %s50
      %p59 = scmp.eq.s32.totalorder %s16, 1
      %p60 = por %p58, %p59
      %p61 = scmp.ne.s32.totalorder %s50, %s51
      %p62 = scmp.eq.s32.totalorder %s16, 0
      %p63 = por %p61, %p62
      %p64 = scmp.ne.s32.totalorder %s50, %s51
      %p65 = scmp.eq.s32.totalorder %s17, 1
      %p66 = por %p64, %p65
      %p68 = scmp.ne.s32.totalorder %s51, %s67
      %p69 = scmp.eq.s32.totalorder %s17, 0
      %p70 = por %p68, %p69
      %s71 = ssub.s32 %s11, %s18
      %p72 = scmp.eq.s32.totalorder %s71, 0
      %s74 = sadd.s32 %s73, 1
      %s75 = scalar_select %p72, %s73, %s74
      %p78 = pneg %p72
      %p79 = scmp.eq.s32.totalorder %s11, 1
      %p80 = por %p78, %p79
      %p81 = scmp.ne.s32.totalorder %s73, %s76
      %p82 = scmp.eq.s32.totalorder %s11, 0
      %p83 = por %p81, %p82
      %p84 = scmp.ne.s32.totalorder %s73, %s76
      %p85 = scmp.eq.s32.totalorder %s16, 1
      %p86 = por %p84, %p85
      %p87 = scmp.ne.s32.totalorder %s76, %s77
      %p88 = scmp.eq.s32.totalorder %s16, 0
      %p89 = por %p87, %p88
      %p90 = scmp.ne.s32.totalorder %s76, %s77
      %p91 = scmp.eq.s32.totalorder %s17, 1
      %p92 = por %p90, %p91
      %p94 = scmp.ne.s32.totalorder %s77, %s93
      %p95 = scmp.eq.s32.totalorder %s17, 0
      %p96 = por %p94, %p95
      %p97 = scmp.le.s32.totalorder 1, %s11
      %p98 = scmp.lt.s32.totalorder %s11, 3
      %p99 = pnand %p97, %p98
      %p100 = pneg %p99
      // Predicated region
      $region9: #{tpu_custom_call.1} parent=5 // pred_check
        _
      $region10: #{tpu_custom_call.1} parent=5 // pred_check_branch
        %102 = sbr.rel (%p99) target = $region12
      $region11: #{tpu_custom_call.1} parent=5 // pred_region
        %s103 = ssub.s32 %s11, 1
      $region12: #{tpu_custom_call.1} parent=5 // pred_fallthru
        _
      %p104 = scmp.lt.s32.totalorder %s11, 2
      // Predicated region
      $region13: #{tpu_custom_call.1} parent=5 // pred_check
        %p105 = pneg %p104
      $region14: #{tpu_custom_call.1} parent=5 // pred_check_branch
        %107 = sbr.rel (%p105) target = $region16
      $region15: #{tpu_custom_call.1} parent=5 // pred_region
        // Predicated region
        $region17: #{tpu_custom_call.1} parent=15 // pred_check
          %p108 = pneg %p31
        $region18: #{tpu_custom_call.1} parent=15 // pred_check_branch
          %110 = sbr.rel (%p108) target = $region20
        $region19: #{tpu_custom_call.1} parent=15 // pred_region
          %p111 = scmp.lt.s32.totalorder %s11, 1
          %s112 = scalar_select %p111, %s11, 1
          %s113 = smul.addr %s112, 8
          %s114 = scalar_lea.vmem %s0, %s113
        $region20: #{tpu_custom_call.1} parent=15 // pred_fallthru
          _
        // Predicated region
        $region21: #{tpu_custom_call.1} parent=15 // pred_check
          %p115 = pneg %p57
        $region22: #{tpu_custom_call.1} parent=15 // pred_check_branch
          %117 = sbr.rel (%p115) target = $region24
        $region23: #{tpu_custom_call.1} parent=15 // pred_region
          %p118 = scmp.lt.s32.totalorder %s11, 1
          %s119 = scalar_select %p118, %s11, 1
          %s120 = smul.addr %s119, 8
          %s121 = scalar_lea.vmem %s1, %s120
        $region24: #{tpu_custom_call.1} parent=15 // pred_fallthru
          _
      $region16: #{tpu_custom_call.1} parent=5 // pred_fallthru
        _
      %p122 = scmp.le.s32.totalorder 1, %s11
      %p123 = scmp.lt.s32.totalorder %s11, 3
      %p124 = pnand %p122, %p123
      %p125 = pneg %p124
      // Predicated region
      $region25: #{tpu_custom_call.1} parent=5 // pred_check
        _
      $region26: #{tpu_custom_call.1} parent=5 // pred_check_branch
        %127 = sbr.rel (%p124) target = $region28
      $region27: #{tpu_custom_call.1} parent=5 // pred_region
        %s128 = ssub.s32 %s11, 1
        %p129 = scmp.lt.s32.totalorder %s16, 1
        %s130 = scalar_select %p129, %s16, 1
        %s131 = smul.addr %s130, 8
        %s132 = scalar_lea.vmem %s0, %s131
        %p133 = pneg %p37
        %p134 = pneg %p34
        %p135 = scmp.lt.s32.totalorder %s16, 1
        %s136 = scalar_select %p135, %s16, 1
        %s137 = smul.addr %s136, 8
        %s138 = scalar_lea.vmem %s1, %s137
        %p139 = pneg %p63
        %p140 = pneg %p60
        %p141 = pneg %p89
        %p142 = pneg %p86
        %s143 = sand.u32 %s76, 1
        %s144 = scalar_lea.sflag [#allocation3], %s143
        %s145 = sand.u32 %s76, 1
        %s146 = smul.addr %s145, 8
        %s147 = scalar_lea.vmem [#allocation2], %s146
        %p148 = scmp.lt.s32.totalorder %s16, 1
        %s149 = scalar_select %p148, %s16, 1
        %s150 = smul.addr %s149, 8
        %s151 = scalar_lea.vmem %s0, %s150
        %p152 = scmp.lt.s32.totalorder %s16, 1
        %s153 = scalar_select %p152, %s16, 1
        %s154 = smul.addr %s153, 8
        %s155 = scalar_lea.vmem %s1, %s154
        %v156 = vld [vmem:[%s151] sm:$0xff]
        %vm157 = vcmp.gt.f32.partialorder %v156, 0.1
        %v158 = vld [vmem:[%s155] sm:$0xff]
        %v159 = vsel %vm157, 1, 0
        %160 = vset.pattern.permute.xlu0 0
        %161 = vperm.xlu0 %160, %v159
        %v162 = vpop.permute.xlu0 %161
        %vm163 = vcmp.eq.s32.totalorder %v162, 1
        %v164 = vsel %vm163, %v158, 0.0
        %vm165 = vcmask 261120
        %166 = vst.msk [vmem:[%s147] sm:$0xff] %vm165, %v164
        %s167 = sand.u32 %s76, 1
        %s168 = scalar_lea.sflag [#allocation3], %s167
        %s169 = sand.u32 %s76, 1
        %s170 = smul.addr %s169, 8
        %s171 = scalar_lea.vmem [#allocation2], %s170
        // Predicated region
        $region29: #{tpu_custom_call.1} parent=27 // pred_check
          %p172 = pneg %p86
        $region30: #{tpu_custom_call.1} parent=27 // pred_check_branch
          %174 = sbr.rel (%p172) target = $region32
        $region31: #{tpu_custom_call.1} parent=27 // pred_region
          %s176 = ssub.s32 128, 128
          %177 = vsyncadd %s168, %s176
          %s178 = smul.addr %s16, 128
          %s179 = scalar_lea.hbm %s2, %s178
          %s181 = sshll.u32 %s171, 4
          %s182 = int_to_ptr.vmem [resolvable:$true] %s181
          %184 = dma.vmem_to_hbm [thread:$0]  %s182, 128, %s179, %s168
        $region32: #{tpu_custom_call.1} parent=27 // pred_fallthru
          _
      $region28: #{tpu_custom_call.1} parent=5 // pred_fallthru
        _
      %p185 = scmp.le.s32.totalorder 2, %s11
      // Predicated region
      $region33: #{tpu_custom_call.1} parent=5 // pred_check
        %p186 = pneg %p185
      $region34: #{tpu_custom_call.1} parent=5 // pred_check_branch
        %188 = sbr.rel (%p186) target = $region36
      $region35: #{tpu_custom_call.1} parent=5 // pred_region
        %s189 = ssub.s32 %s11, 2
        // Predicated region
        $region37: #{tpu_custom_call.1} parent=35 // pred_check
          %p190 = pneg %p92
        $region38: #{tpu_custom_call.1} parent=35 // pred_check_branch
          %192 = sbr.rel (%p190) target = $region40
        $region39: #{tpu_custom_call.1} parent=35 // pred_region
          %s193 = sand.u32 %s77, 1
          %s194 = scalar_lea.sflag [#allocation3], %s193
          %s195 = sand.u32 %s77, 1
          %s196 = smul.addr %s195, 8
          %s197 = scalar_lea.vmem [#allocation2], %s196
          %198 = dma.done %s194, 128
        $region40: #{tpu_custom_call.1} parent=35 // pred_fallthru
          _
      $region36: #{tpu_custom_call.1} parent=5 // pred_fallthru
        _
    $region6: #{tpu_custom_call.1} parent=1 // loop_footer
      %s15 = sadd.s32 1, %s11
    $region7: #{tpu_custom_call.1} parent=1 // loop_footer_branch
      %10 = sbr.rel target = $region3
    $region8: #{tpu_custom_call.1} parent=1 // loop_exit
      _
    %199 = vsyncpa [#allocation3], 1
    %s200 = scalar_lea.sflag [#allocation3], 1
    %201 = vsyncpa %s200, 1

</llo_original>
